<compile_context>
chip_gen: v7x
topology: tpu7x:2x2x1
jax: 0.10.0
libtpu: 0.0.40
codegen_flags: <defaults>
</compile_context>

<pallas_src>
import functools

import jax
import jax.numpy as jnp
from jax.experimental import pallas as pl
from jax.experimental.pallas import tpu as pltpu


def _t2i_final_kernel(x_ref, wb_ref, bb_ref, o_ref, *, eps, inv_c):
    # x_ref  : (1, tn, C)  token tile of batch b
    # wb_ref : (1, C, E)   per-batch modulated weight  W^T * (1 + scale_b)[:, None]
    # bb_ref : (1, 1, E)   per-batch modulated bias    bias + shift_b @ W^T
    # o_ref  : (1, tn, E)
    x = x_ref[0].astype(jnp.float32)                       # (tn, C)

    # --- Single-pass LayerNorm statistics (no affine, biased variance) ---
    sx = jnp.sum(x, axis=-1, keepdims=True)                # (tn, 1)
    sxx = jnp.sum(x * x, axis=-1, keepdims=True)           # (tn, 1)
    mean = sx * inv_c
    var = sxx * inv_c - mean * mean
    r = jax.lax.rsqrt(var + eps)                           # (tn, 1)

    # Fused normalize: (x - mean) * r == x * r - mean * r (no xc/xn temporaries).
    xn = x * r - mean * r                                  # (tn, C) f32

    # Modulation already folded into wb/bb:  xm @ W^T + b  ==  xn @ wb + bb.
    acc = jnp.dot(xn.astype(wb_ref.dtype), wb_ref[0],
                  preferred_element_type=jnp.float32)      # (tn, E) f32
    o_ref[0] = (acc + bb_ref[0].astype(jnp.float32)).astype(o_ref.dtype)


def _pick_token_tile(N, C, E, x_itemsize, o_itemsize, budget_bytes, max_tn=2048):
    """Largest token tile (multiple of 8) whose double-buffered in/out fits budget."""
    e_pad = ((max(E, 1) + 127) // 128) * 128               # lane-padded out width in VMEM
    per_row = 2 * C * x_itemsize + 2 * e_pad * o_itemsize  # double-buffered x + out
    tn = budget_bytes // max(per_row, 1)
    tn = min(tn, max_tn)
    tn = max(8, (tn // 8) * 8)
    if tn >= N:
        return N                                           # full-dim block is always legal
    return tn


def t2i_final_layer(x, t, scale_shift_table, weight, bias, *,
                    eps=1e-6, vmem_budget_bytes=24 << 20):
    """
    x                 : (B, N, C)
    t                 : (B, C)
    scale_shift_table : (2, C)
    weight            : (E, C)    PyTorch nn.Linear weight, E = patch*patch*out_channels
    bias              : (E,)
    returns           : (B, N, E)
    """
    B, N, C = x.shape
    E, C_w = weight.shape
    assert C_w == C and t.shape == (B, C) and scale_shift_table.shape == (2, C)

    # --- Fold the per-batch t2i modulation into the (tiny) Linear weight/bias. ---
    #   xm @ W^T + b = (xn*(1+scale_b)) @ W^T + shift_b @ W^T + b
    #               =  xn @ (W^T * (1+scale_b)[:,None]) + (b + shift_b @ W^T)
    f32 = jnp.float32
    shift = scale_shift_table[0][None, :].astype(f32) + t.astype(f32)     # (B, C)
    scale = scale_shift_table[1][None, :].astype(f32) + t.astype(f32)     # (B, C)
    w_t = weight.T                                                        # (C, E)
    w_mod = (w_t.astype(f32)[None, :, :]
             * (1.0 + scale)[:, :, None]).astype(weight.dtype)            # (B, C, E)
    b_mod = (bias.astype(f32)[None, None, :]
             + jnp.einsum("bc,ce->be", shift, w_t.astype(f32))[:, None, :])  # (B, 1, E)

    # --- Token tile: dtype/C-aware, sized against a VMEM budget. ---
    x_itemsize = jnp.dtype(x.dtype).itemsize
    o_itemsize = jnp.dtype(x.dtype).itemsize
    tn_eff = _pick_token_tile(N, C, E, x_itemsize, o_itemsize, vmem_budget_bytes)
    n_tiles = pl.cdiv(N, tn_eff)

    # v7x has 2 TensorCores sharded over the "parallel" grid axes: make sure there
    # are at least 2 grid steps if the tile collapsed everything into one.
    if B * n_tiles < 2 and N > 8:
        tn_eff = max(8, ((pl.cdiv(N, 2) + 7) // 8) * 8)
        n_tiles = pl.cdiv(N, tn_eff)

    # Scoped-VMEM limit: big-buffer usage + headroom (raises v5e's 16 MiB default).
    e_pad = ((max(E, 1) + 127) // 128) * 128
    usage_est = (2 * tn_eff * C * x_itemsize
                 + 2 * tn_eff * e_pad * o_itemsize
                 + 2 * C * e_pad * jnp.dtype(weight.dtype).itemsize
                 + 2 * 8 * e_pad * 4)
    vmem_limit_bytes = max(32 << 20, int(usage_est) + (8 << 20))

    cost = pl.CostEstimate(
        flops=2 * B * N * C * E,
        transcendentals=B * N,                                 # one rsqrt per token
        bytes_accessed=(B * N * C * x_itemsize + B * N * E * o_itemsize
                        + B * C * E * jnp.dtype(weight.dtype).itemsize + B * E * 4),
    )

    out = pl.pallas_call(
        functools.partial(_t2i_final_kernel, eps=eps, inv_c=1.0 / C),
        out_shape=jax.ShapeDtypeStruct((B, N, E), x.dtype),
        grid_spec=pltpu.PrefetchScalarGridSpec(
            num_scalar_prefetch=0,
            grid=(B, n_tiles),
            in_specs=[
                pl.BlockSpec((1, tn_eff, C), lambda b, i: (b, i, 0)),   # x tile
                pl.BlockSpec((1, C, E), lambda b, i: (b, 0, 0)),        # modulated W (per-b)
                pl.BlockSpec((1, 1, E), lambda b, i: (b, 0, 0)),        # modulated bias
            ],
            out_specs=pl.BlockSpec((1, tn_eff, E), lambda b, i: (b, i, 0)),
        ),
        compiler_params=pltpu.CompilerParams(
            dimension_semantics=("parallel", "parallel"),
            vmem_limit_bytes=vmem_limit_bytes,
        ),
        cost_estimate=cost,
    )(x, w_mod, b_mod)

    return out


def _reference(x, t, sst, weight, bias, eps=1e-6):
    """Pure-JAX reference mirroring the PyTorch forward."""
    mean = jnp.mean(x, axis=-1, keepdims=True)
    var = jnp.mean((x - mean) ** 2, axis=-1, keepdims=True)
    xn = (x - mean) * jax.lax.rsqrt(var + eps)
    shift = (sst[0][None, :] + t)[:, None, :]          # (B, 1, C)
    scale = (sst[1][None, :] + t)[:, None, :]          # (B, 1, C)
    xm = xn * (1 + scale) + shift
    return jnp.einsum("bnc,ec->bne", xm, weight) + bias[None, None, :]


if __name__ == "__main__":
    # Small shapes consistent with the module:
    # batch=2, hidden_size=32, patch_size=2, out_channels=4 -> out_dim=16, seq=64 tokens.
    B, N = 2, 64
    hidden_size = 32
    patch_size = 2
    out_channels = 4
    E = patch_size * patch_size * out_channels      # 16

    key = jax.random.PRNGKey(0)
    kx, kt, ks, kw, kb = jax.random.split(key, 5)

    x = jax.random.normal(kx, (B, N, hidden_size), dtype=jnp.float32)
    t = jax.random.normal(kt, (B, hidden_size), dtype=jnp.float32)
    scale_shift_table = (jax.random.normal(ks, (2, hidden_size), dtype=jnp.float32)
                         / jnp.sqrt(hidden_size))
    weight = (jax.random.normal(kw, (E, hidden_size), dtype=jnp.float32)
              / jnp.sqrt(hidden_size))
    bias = jax.random.normal(kb, (E,), dtype=jnp.float32) * 0.01

    out = t2i_final_layer(x, t, scale_shift_table, weight, bias)
    out = jax.block_until_ready(out)

    ref = _reference(x, t, scale_shift_table, weight, bias)
    assert out.shape == (B, N, E)
    assert jnp.allclose(out, ref, atol=2e-3, rtol=2e-3)

    print("KERNEL_OK")
</pallas_src>

<mosaic_0001>
module attributes {stable_mosaic.version = 11 : i64} {
  func.func @_t2i_final_kernel(%arg0: i32, %arg1: i32, %arg2: memref<1x64x32xf32, #tpu.memory_space<vmem>>, %arg3: memref<1x32x16xf32, #tpu.memory_space<vmem>>, %arg4: memref<1x1x16xf32, #tpu.memory_space<vmem>>, %arg5: memref<1x64x16xf32, #tpu.memory_space<vmem>>) attributes {dimension_semantics = [#tpu.dimension_semantics<parallel>, #tpu.dimension_semantics<parallel>], iteration_bounds = array<i64: 2, 1>, scalar_prefetch = 0 : i64, scratch_operands = 0 : i64, tpu.core_type = #tpu.core_type<tc>, window_params = [{transform_indices = @transform_0, window_bounds = array<i64: 1, 64, 32>}, {transform_indices = @transform_1, window_bounds = array<i64: 1, 32, 16>}, {transform_indices = @transform_2, window_bounds = array<i64: 1, 1, 16>}, {transform_indices = @transform_3, window_bounds = array<i64: 1, 64, 16>}]} {
    %c0 = arith.constant 0 : index
    %c0_0 = arith.constant 0 : index
    %c0_1 = arith.constant 0 : index
    %0 = vector.load %arg2[%c0, %c0_0, %c0_1] : memref<1x64x32xf32, #tpu.memory_space<vmem>>, vector<1x64x32xf32>
    %1 = vector.shape_cast %0 : vector<1x64x32xf32> to vector<64x32xf32>
    %cst = arith.constant dense<0.000000e+00> : vector<64xf32>
    %2 = vector.multi_reduction <add>, %1, %cst [1] : vector<64x32xf32> to vector<64xf32>
    %3 = vector.shape_cast %2 : vector<64xf32> to vector<64x1xf32>
    %4 = arith.mulf %1, %1 : vector<64x32xf32>
    %cst_2 = arith.constant dense<0.000000e+00> : vector<64xf32>
    %5 = vector.multi_reduction <add>, %4, %cst_2 [1] : vector<64x32xf32> to vector<64xf32>
    %6 = vector.shape_cast %5 : vector<64xf32> to vector<64x1xf32>
    %cst_3 = arith.constant 3.125000e-02 : f32
    %7 = vector.broadcast %cst_3 : f32 to vector<64x1xf32>
    %8 = arith.mulf %3, %7 : vector<64x1xf32>
    %cst_4 = arith.constant 3.125000e-02 : f32
    %9 = vector.broadcast %cst_4 : f32 to vector<64x1xf32>
    %10 = arith.mulf %6, %9 : vector<64x1xf32>
    %11 = arith.mulf %8, %8 : vector<64x1xf32>
    %12 = arith.subf %10, %11 : vector<64x1xf32>
    %cst_5 = arith.constant 9.99999997E-7 : f32
    %13 = vector.broadcast %cst_5 : f32 to vector<64x1xf32>
    %14 = arith.addf %12, %13 : vector<64x1xf32>
    %15 = math.rsqrt %14 : vector<64x1xf32>
    %16 = vector.broadcast %15 : vector<64x1xf32> to vector<64x32xf32>
    %17 = arith.mulf %1, %16 : vector<64x32xf32>
    %18 = arith.mulf %8, %15 : vector<64x1xf32>
    %19 = vector.broadcast %18 : vector<64x1xf32> to vector<64x32xf32>
    %20 = arith.subf %17, %19 : vector<64x32xf32>
    %c0_6 = arith.constant 0 : index
    %c0_7 = arith.constant 0 : index
    %c0_8 = arith.constant 0 : index
    %21 = vector.load %arg3[%c0_6, %c0_7, %c0_8] : memref<1x32x16xf32, #tpu.memory_space<vmem>>, vector<1x32x16xf32>
    %22 = vector.shape_cast %21 : vector<1x32x16xf32> to vector<32x16xf32>
    %cst_9 = arith.constant dense<0.000000e+00> : vector<64x16xf32>
    %23 = tpu.matmul %20, %22, %cst_9 {dimension_numbers = #tpu.dot_dimension_numbers<[1], [0], [0], [1], [0, 0, 1, 1], [], []>} : vector<64x32xf32>, vector<32x16xf32>, vector<64x16xf32> -> vector<64x16xf32>
    %c0_10 = arith.constant 0 : index
    %c0_11 = arith.constant 0 : index
    %c0_12 = arith.constant 0 : index
    %24 = vector.load %arg4[%c0_10, %c0_11, %c0_12] : memref<1x1x16xf32, #tpu.memory_space<vmem>>, vector<1x1x16xf32>
    %25 = vector.shape_cast %24 : vector<1x1x16xf32> to vector<1x16xf32>
    %26 = vector.broadcast %25 : vector<1x16xf32> to vector<64x16xf32>
    %27 = arith.addf %23, %26 : vector<64x16xf32>
    %c0_13 = arith.constant 0 : index
    %c0_14 = arith.constant 0 : index
    %c0_15 = arith.constant 0 : index
    %28 = vector.load %arg5[%c0_13, %c0_14, %c0_15] : memref<1x64x16xf32, #tpu.memory_space<vmem>>, vector<1x64x16xf32>
    %29 = vector.shape_cast %28 : vector<1x64x16xf32> to vector<64x16xf32>
    %30 = vector.shape_cast %27 : vector<64x16xf32> to vector<1x64x16xf32>
    tpu.vector_store %arg5[%c0_13, %c0_14, %c0_15], %30 {strides = array<i32>} : memref<1x64x16xf32, #tpu.memory_space<vmem>>, vector<1x64x16xf32>,
    return
  }
  func.func @transform_0(%arg0: i32, %arg1: i32) -> (i32, i32, i32) {
    %c0_i32 = arith.constant 0 : i32
    %c0_i32_0 = arith.constant 0 : i32
    return %arg0, %arg1, %c0_i32 : i32, i32, i32
  }
  func.func @transform_1(%arg0: i32, %arg1: i32) -> (i32, i32, i32) {
    %c0_i32 = arith.constant 0 : i32
    %c0_i32_0 = arith.constant 0 : i32
    %c0_i32_1 = arith.constant 0 : i32
    return %arg0, %c0_i32, %c0_i32_0 : i32, i32, i32
  }
  func.func @transform_2(%arg0: i32, %arg1: i32) -> (i32, i32, i32) {
    %c0_i32 = arith.constant 0 : i32
    %c0_i32_0 = arith.constant 0 : i32
    %c0_i32_1 = arith.constant 0 : i32
    return %arg0, %c0_i32, %c0_i32_0 : i32, i32, i32
  }
  func.func @transform_3(%arg0: i32, %arg1: i32) -> (i32, i32, i32) {
    %c0_i32 = arith.constant 0 : i32
    %c0_i32_0 = arith.constant 0 : i32
    return %arg0, %arg1, %c0_i32 : i32, i32, i32
  }
}

</mosaic_0001>

<llo_original>
// kernel: tpu_custom_call.1
$region0: #{tpu_custom_call.1}
  #allocation0 [shape = 'u32[]', space=smem, size = 0x4, offset = 0x4, fixed_abs, tag = 'smem constant byte address 0x4 - core index']
  #allocation1 [shape = 'u32[144,128]{1,0:T(1,128)}', space=vmem, size = 0x12000, scoped, tag = 'internal scratch']
  %s0 = inlined_call_operand.vmem [shape: f32[2,64,32], index: 0, kind: input, shape index: {}]
  %s1 = inlined_call_operand.vmem [shape: f32[2,32,16], index: 1, kind: input, shape index: {}]
  %s2 = inlined_call_operand.vmem [shape: f32[2,1,16], index: 2, kind: input, shape index: {}]
  %s3 = inlined_call_operand.vmem [shape: f32[2,64,16], index: 3, kind: output, shape index: {}]
  %s4 = sld [smem:[#allocation0]]
  $region45: #{tpu_custom_call.1} parent=0
    _
  %s6 = ssub.s32 1, %s4
  %s7 = scalar_select 0, %s6, %s4
  loop: start=0, step=1, limit=4
  $region2: #{tpu_custom_call.1} parent=0 // loop_pre_header
    _
  $region3: #{tpu_custom_call.1} parent=0 // loop_header
    %s9 = sphi 0, %s13
    %p10 = scmp.ge.s32.totalorder %s9, 4
    %s16 = sphi 0, %s28
    %s17 = sphi 0, %s24
    %s18 = sphi 0, %s16
    %s19 = sphi 0, %s17
    %s20 = sphi 0, %s18
    %s21 = sphi 0, %s19
    %s33 = sphi 0, %s35
    %s36 = sphi 0, %s33
    %s37 = sphi 0, %s36
    %s53 = sphi 0, %s37
    %s59 = sphi 0, %s61
    %s62 = sphi 0, %s59
    %s63 = sphi 0, %s62
    %s79 = sphi 0, %s63
    %s85 = sphi 0, %s87
    %s88 = sphi 0, %s85
    %s89 = sphi 0, %s88
    %s105 = sphi 0, %s89
    %s113 = sphi 0, %s115
    %s116 = sphi 0, %s113
    %s117 = sphi 0, %s116
    %s133 = sphi 0, %s117
  $region4: #{tpu_custom_call.1} parent=0 // loop_header_branch
    %12 = sbr.rel (%p10) target = $region8
  $region5: #{tpu_custom_call.1} parent=0 // loop_body
    %s14 = ssub.s32 %s9, 1
    %s15 = ssub.s32 %s9, 2
    %s22 = sadd.s32 1, %s17
    %p23 = scmp.ge.s32.totalorder %s22, 1
    %s24 = scalar_select %p23, 0, %s22
    %s25 = sadd.s32 1, %s16
    %s26 = scalar_select %p23, %s25, %s16
    %p27 = scmp.ge.s32.totalorder %s26, 2
    %s28 = scalar_select %p27, 0, %s26
    %s29 = ssub.s32 %s16, %s28
    %s30 = ssub.s32 %s17, %s24
    %s31 = sor.u32 %s29, %s30
    %p32 = scmp.eq.s32.totalorder %s31, 0
    %s34 = sadd.s32 %s33, 1
    %s35 = scalar_select %p32, %s33, %s34
    %p38 = pneg %p32
    %p39 = scmp.eq.s32.totalorder %s9, 1
    %p40 = por %p38, %p39
    %p41 = scmp.ne.s32.totalorder %s33, %s36
    %p42 = scmp.eq.s32.totalorder %s9, 0
    %p43 = por %p41, %p42
    %p44 = scmp.ne.s32.totalorder %s33, %s36
    %p45 = scmp.eq.s32.totalorder %s14, 1
    %p46 = por %p44, %p45
    %p47 = scmp.ne.s32.totalorder %s36, %s37
    %p48 = scmp.eq.s32.totalorder %s14, 0
    %p49 = por %p47, %p48
    %p50 = scmp.ne.s32.totalorder %s36, %s37
    %p51 = scmp.eq.s32.totalorder %s15, 1
    %p52 = por %p50, %p51
    %p54 = scmp.ne.s32.totalorder %s37, %s53
    %p55 = scmp.eq.s32.totalorder %s15, 0
    %p56 = por %p54, %p55
    %s57 = ssub.s32 %s16, %s28
    %p58 = scmp.eq.s32.totalorder %s57, 0
    %s60 = sadd.s32 %s59, 1
    %s61 = scalar_select %p58, %s59, %s60
    %p64 = pneg %p58
    %p65 = scmp.eq.s32.totalorder %s9, 1
    %p66 = por %p64, %p65
    %p67 = scmp.ne.s32.totalorder %s59, %s62
    %p68 = scmp.eq.s32.totalorder %s9, 0
    %p69 = por %p67, %p68
    %p70 = scmp.ne.s32.totalorder %s59, %s62
    %p71 = scmp.eq.s32.totalorder %s14, 1
    %p72 = por %p70, %p71
    %p73 = scmp.ne.s32.totalorder %s62, %s63
    %p74 = scmp.eq.s32.totalorder %s14, 0
    %p75 = por %p73, %p74
    %p76 = scmp.ne.s32.totalorder %s62, %s63
    %p77 = scmp.eq.s32.totalorder %s15, 1
    %p78 = por %p76, %p77
    %p80 = scmp.ne.s32.totalorder %s63, %s79
    %p81 = scmp.eq.s32.totalorder %s15, 0
    %p82 = por %p80, %p81
    %s83 = ssub.s32 %s16, %s28
    %p84 = scmp.eq.s32.totalorder %s83, 0
    %s86 = sadd.s32 %s85, 1
    %s87 = scalar_select %p84, %s85, %s86
    %p90 = pneg %p84
    %p91 = scmp.eq.s32.totalorder %s9, 1
    %p92 = por %p90, %p91
    %p93 = scmp.ne.s32.totalorder %s85, %s88
    %p94 = scmp.eq.s32.totalorder %s9, 0
    %p95 = por %p93, %p94
    %p96 = scmp.ne.s32.totalorder %s85, %s88
    %p97 = scmp.eq.s32.totalorder %s14, 1
    %p98 = por %p96, %p97
    %p99 = scmp.ne.s32.totalorder %s88, %s89
    %p100 = scmp.eq.s32.totalorder %s14, 0
    %p101 = por %p99, %p100
    %p102 = scmp.ne.s32.totalorder %s88, %s89
    %p103 = scmp.eq.s32.totalorder %s15, 1
    %p104 = por %p102, %p103
    %p106 = scmp.ne.s32.totalorder %s89, %s105
    %p107 = scmp.eq.s32.totalorder %s15, 0
    %p108 = por %p106, %p107
    %s109 = ssub.s32 %s16, %s28
    %s110 = ssub.s32 %s17, %s24
    %s111 = sor.u32 %s109, %s110
    %p112 = scmp.eq.s32.totalorder %s111, 0
    %s114 = sadd.s32 %s113, 1
    %s115 = scalar_select %p112, %s113, %s114
    %p118 = pneg %p112
    %p119 = scmp.eq.s32.totalorder %s9, 1
    %p120 = por %p118, %p119
    %p121 = scmp.ne.s32.totalorder %s113, %s116
    %p122 = scmp.eq.s32.totalorder %s9, 0
    %p123 = por %p121, %p122
    %p124 = scmp.ne.s32.totalorder %s113, %s116
    %p125 = scmp.eq.s32.totalorder %s14, 1
    %p126 = por %p124, %p125
    %p127 = scmp.ne.s32.totalorder %s116, %s117
    %p128 = scmp.eq.s32.totalorder %s14, 0
    %p129 = por %p127, %p128
    %p130 = scmp.ne.s32.totalorder %s116, %s117
    %p131 = scmp.eq.s32.totalorder %s15, 1
    %p132 = por %p130, %p131
    %p134 = scmp.ne.s32.totalorder %s117, %s133
    %p135 = scmp.eq.s32.totalorder %s15, 0
    %p136 = por %p134, %p135
    %p137 = scmp.le.s32.totalorder 1, %s9
    %p138 = scmp.lt.s32.totalorder %s9, 3
    %p139 = pnand %p137, %p138
    %p140 = pneg %p139
    // Predicated region
    $region9: #{tpu_custom_call.1} parent=5 // pred_check
      _
    $region10: #{tpu_custom_call.1} parent=5 // pred_check_branch
      %142 = sbr.rel (%p139) target = $region12
    $region11: #{tpu_custom_call.1} parent=5 // pred_region
      %s143 = ssub.s32 %s9, 1
    $region12: #{tpu_custom_call.1} parent=5 // pred_fallthru
      _
    %p144 = scmp.lt.s32.totalorder %s9, 2
    // Predicated region
    $region13: #{tpu_custom_call.1} parent=5 // pred_check
      %p145 = pneg %p144
    $region14: #{tpu_custom_call.1} parent=5 // pred_check_branch
      %147 = sbr.rel (%p145) target = $region16
    $region15: #{tpu_custom_call.1} parent=5 // pred_region
      // Predicated region
      $region17: #{tpu_custom_call.1} parent=15 // pred_check
        %p148 = pneg %p43
      $region18: #{tpu_custom_call.1} parent=15 // pred_check_branch
        %150 = sbr.rel (%p148) target = $region20
      $region19: #{tpu_custom_call.1} parent=15 // pred_region
        %s151 = smul.u32 8, %s17
        %p152 = scmp.lt.s32.totalorder %s16, 1
        %s153 = scalar_select %p152, %s16, 1
        %p154 = scmp.lt.s32.totalorder %s151, 7
        %s155 = scalar_select %p154, %s151, 7
        %s156 = smul.addr %s153, 8
        %s157 = sadd.s32 %s155, %s156
        %s158 = smul.addr %s157, 8
        %s159 = scalar_lea.vmem %s0, %s158
        %s160 = smul.u32 8, %s17
      $region20: #{tpu_custom_call.1} parent=15 // pred_fallthru
        _
      // Predicated region
      $region21: #{tpu_custom_call.1} parent=15 // pred_check
        %p161 = pneg %p69
      $region22: #{tpu_custom_call.1} parent=15 // pred_check_branch
        %163 = sbr.rel (%p161) target = $region24
      $region23: #{tpu_custom_call.1} parent=15 // pred_region
        %p164 = scmp.lt.s32.totalorder %s16, 1
        %s165 = scalar_select %p164, %s16, 1
        %s166 = smul.addr %s165, 4
        %s167 = smul.addr %s166, 8
        %s168 = scalar_lea.vmem %s1, %s167
      $region24: #{tpu_custom_call.1} parent=15 // pred_fallthru
        _
      // Predicated region
      $region25: #{tpu_custom_call.1} parent=15 // pred_check
        %p169 = pneg %p95
      $region26: #{tpu_custom_call.1} parent=15 // pred_check_branch
        %171 = sbr.rel (%p169) target = $region28
      $region27: #{tpu_custom_call.1} parent=15 // pred_region
        %p172 = scmp.lt.s32.totalorder %s16, 1
        %s173 = scalar_select %p172, %s16, 1
        %s174 = scalar_lea.vmem %s2, %s173
      $region28: #{tpu_custom_call.1} parent=15 // pred_fallthru
        _
    $region16: #{tpu_custom_call.1} parent=5 // pred_fallthru
      _
    %p175 = scmp.le.s32.totalorder 1, %s9
    %p176 = scmp.lt.s32.totalorder %s9, 3
    %p177 = pnand %p175, %p176
    %p178 = pneg %p177
    // Predicated region
    $region29: #{tpu_custom_call.1} parent=5 // pred_check
      _
    $region30: #{tpu_custom_call.1} parent=5 // pred_check_branch
      %180 = sbr.rel (%p177) target = $region32
    $region31: #{tpu_custom_call.1} parent=5 // pred_region
      %s181 = ssub.s32 %s9, 1
      %s182 = smul.u32 8, %s19
      %p183 = scmp.lt.s32.totalorder %s18, 1
      %s184 = scalar_select %p183, %s18, 1
      %p185 = scmp.lt.s32.totalorder %s182, 7
      %s186 = scalar_select %p185, %s182, 7
      %s187 = smul.addr %s184, 8
      %s188 = sadd.s32 %s186, %s187
      %s189 = smul.addr %s188, 8
      %s190 = scalar_lea.vmem %s0, %s189
      %p191 = pneg %p49
      %p192 = pneg %p46
      %p193 = scmp.lt.s32.totalorder %s18, 1
      %s194 = scalar_select %p193, %s18, 1
      %s195 = smul.addr %s194, 4
      %s196 = smul.addr %s195, 8
      %s197 = scalar_lea.vmem %s1, %s196
      %p198 = pneg %p75
      %p199 = pneg %p72
      %p200 = scmp.lt.s32.totalorder %s18, 1
      %s201 = scalar_select %p200, %s18, 1
      %s202 = scalar_lea.vmem %s2, %s201
      %p203 = pneg %p101
      %p204 = pneg %p98
      %p205 = pneg %p129
      %p206 = pneg %p126
      %s207 = smul.u32 8, %s19
      %p208 = scmp.lt.s32.totalorder %s18, 1
      %s209 = scalar_select %p208, %s18, 1
      %p210 = scmp.lt.s32.totalorder %s207, 7
      %s211 = scalar_select %p210, %s207, 7
      %s212 = smul.addr %s209, 8
      %s213 = sadd.s32 %s211, %s212
      %s214 = smul.addr %s213, 8
      %s215 = scalar_lea.vmem %s3, %s214
      %s216 = smul.u32 8, %s19
      %p217 = scmp.lt.s32.totalorder %s18, 1
      %s218 = scalar_select %p217, %s18, 1
      %p219 = scmp.lt.s32.totalorder %s216, 7
      %s220 = scalar_select %p219, %s216, 7
      %s221 = smul.addr %s218, 8
      %s222 = sadd.s32 %s220, %s221
      %s223 = smul.addr %s222, 8
      %s224 = scalar_lea.vmem %s0, %s223
      %s225 = smul.u32 8, %s19
      %p226 = scmp.lt.s32.totalorder %s18, 1
      %s227 = scalar_select %p226, %s18, 1
      %s228 = smul.addr %s227, 4
      %s229 = smul.addr %s228, 8
      %s230 = scalar_lea.vmem %s1, %s229
      %p231 = scmp.lt.s32.totalorder %s18, 1
      %s232 = scalar_select %p231, %s18, 1
      %s233 = scalar_lea.vmem %s2, %s232
      %s234 = smul.u32 8, %s19
      %p235 = scmp.lt.s32.totalorder %s18, 1
      %s236 = scalar_select %p235, %s18, 1
      %p237 = scmp.lt.s32.totalorder %s234, 7
      %s238 = scalar_select %p237, %s234, 7
      %s239 = smul.addr %s236, 8
      %s240 = sadd.s32 %s238, %s239
      %s241 = smul.addr %s240, 8
      %s242 = scalar_lea.vmem %s3, %s241
      %s243 = smul.u32 8, %s19
      %v244 = vld [vmem:[%s224] sm:$0xff]
      %v245 = vld [vmem:[%s224 + $0x8] sm:$0xff]
      %v246 = vld [vmem:[%s224 + $0x10] sm:$0xff]
      %v247 = vld [vmem:[%s224 + $0x18] sm:$0xff]
      %v248 = vld [vmem:[%s224 + $0x20] sm:$0xff]
      %v249 = vld [vmem:[%s224 + $0x28] sm:$0xff]
      %v250 = vld [vmem:[%s224 + $0x30] sm:$0xff]
      %v251 = vld [vmem:[%s224 + $0x38] sm:$0xff]
      %vm252 = vcmask 261120
      %v253 = vsel %vm252, %v244, 0.0
      %254 = vadd.xlane.f32.xlu0 %v253
      %v255 = vpop.xlane.xlu0 %254
      %v256 = vsel %vm252, %v245, 0.0
      %257 = vadd.xlane.f32.xlu0 %v256
      %v258 = vpop.xlane.xlu0 %257
      %v259 = vsel %vm252, %v246, 0.0
      %260 = vadd.xlane.f32.xlu0 %v259
      %v261 = vpop.xlane.xlu0 %260
      %v262 = vsel %vm252, %v247, 0.0
      %263 = vadd.xlane.f32.xlu0 %v262
      %v264 = vpop.xlane.xlu0 %263
      %v265 = vsel %vm252, %v248, 0.0
      %266 = vadd.xlane.f32.xlu0 %v265
      %v267 = vpop.xlane.xlu0 %266
      %v268 = vsel %vm252, %v249, 0.0
      %269 = vadd.xlane.f32.xlu0 %v268
      %v270 = vpop.xlane.xlu0 %269
      %v271 = vsel %vm252, %v250, 0.0
      %272 = vadd.xlane.f32.xlu0 %v271
      %v273 = vpop.xlane.xlu0 %272
      %v274 = vsel %vm252, %v251, 0.0
      %275 = vadd.xlane.f32.xlu0 %v274
      %v276 = vpop.xlane.xlu0 %275
      %v277 = vmul.f32 %v244, %v244
      %v278 = vmul.f32 %v245, %v245
      %v279 = vmul.f32 %v246, %v246
      %v280 = vmul.f32 %v247, %v247
      %v281 = vmul.f32 %v248, %v248
      %v282 = vmul.f32 %v249, %v249
      %v283 = vmul.f32 %v250, %v250
      %v284 = vmul.f32 %v251, %v251
      %v285 = vsel %vm252, %v277, 0.0
      %286 = vadd.xlane.f32.xlu0 %v285
      %v287 = vpop.xlane.xlu0 %286
      %v288 = vsel %vm252, %v278, 0.0
      %289 = vadd.xlane.f32.xlu0 %v288
      %v290 = vpop.xlane.xlu0 %289
      %v291 = vsel %vm252, %v279, 0.0
      %292 = vadd.xlane.f32.xlu0 %v291
      %v293 = vpop.xlane.xlu0 %292
      %v294 = vsel %vm252, %v280, 0.0
      %295 = vadd.xlane.f32.xlu0 %v294
      %v296 = vpop.xlane.xlu0 %295
      %v297 = vsel %vm252, %v281, 0.0
      %298 = vadd.xlane.f32.xlu0 %v297
      %v299 = vpop.xlane.xlu0 %298
      %v300 = vsel %vm252, %v282, 0.0
      %301 = vadd.xlane.f32.xlu0 %v300
      %v302 = vpop.xlane.xlu0 %301
      %v303 = vsel %vm252, %v283, 0.0
      %304 = vadd.xlane.f32.xlu0 %v303
      %v305 = vpop.xlane.xlu0 %304
      %v306 = vsel %vm252, %v284, 0.0
      %307 = vadd.xlane.f32.xlu0 %v306
      %v308 = vpop.xlane.xlu0 %307
      %v309 = vmul.f32 %v255, 0.03125
      %v310 = vmul.f32 %v258, 0.03125
      %v311 = vmul.f32 %v261, 0.03125
      %v312 = vmul.f32 %v264, 0.03125
      %v313 = vmul.f32 %v267, 0.03125
      %v314 = vmul.f32 %v270, 0.03125
      %v315 = vmul.f32 %v273, 0.03125
      %v316 = vmul.f32 %v276, 0.03125
      %v317 = vmul.f32 %v287, 0.03125
      %v318 = vmul.f32 %v290, 0.03125
      %v319 = vmul.f32 %v293, 0.03125
      %v320 = vmul.f32 %v296, 0.03125
      %v321 = vmul.f32 %v299, 0.03125
      %v322 = vmul.f32 %v302, 0.03125
      %v323 = vmul.f32 %v305, 0.03125
      %v324 = vmul.f32 %v308, 0.03125
      %v325 = vmul.f32 %v309, %v309
      %v326 = vmul.f32 %v310, %v310
      %v327 = vmul.f32 %v311, %v311
      %v328 = vmul.f32 %v312, %v312
      %v329 = vmul.f32 %v313, %v313
      %v330 = vmul.f32 %v314, %v314
      %v331 = vmul.f32 %v315, %v315
      %v332 = vmul.f32 %v316, %v316
      %v333 = vsub.f32 %v317, %v325
      %v334 = vsub.f32 %v318, %v326
      %v335 = vsub.f32 %v319, %v327
      %v336 = vsub.f32 %v320, %v328
      %v337 = vsub.f32 %v321, %v329
      %v338 = vsub.f32 %v322, %v330
      %v339 = vsub.f32 %v323, %v331
      %v340 = vsub.f32 %v324, %v332
      %v341 = vadd.f32 %v333, 1e-06
      %v342 = vadd.f32 %v334, 1e-06
      %v343 = vadd.f32 %v335, 1e-06
      %v344 = vadd.f32 %v336, 1e-06
      %v345 = vadd.f32 %v337, 1e-06
      %v346 = vadd.f32 %v338, 1e-06
      %v347 = vadd.f32 %v339, 1e-06
      %v348 = vadd.f32 %v340, 1e-06
      %v349 = vrsqrt.pop %v341
      %v350 = vrsqrt.pop %v342
      %v351 = vrsqrt.pop %v343
      %v352 = vrsqrt.pop %v344
      %v353 = vrsqrt.pop %v345
      %v354 = vrsqrt.pop %v346
      %v355 = vrsqrt.pop %v347
      %v356 = vrsqrt.pop %v348
      %v357 = vmul.f32 %v244, %v349
      %v358 = vmul.f32 %v245, %v350
      %v359 = vmul.f32 %v246, %v351
      %v360 = vmul.f32 %v247, %v352
      %v361 = vmul.f32 %v248, %v353
      %v362 = vmul.f32 %v249, %v354
      %v363 = vmul.f32 %v250, %v355
      %v364 = vmul.f32 %v251, %v356
      %v365 = vmul.f32 %v309, %v349
      %v366 = vmul.f32 %v310, %v350
      %v367 = vmul.f32 %v311, %v351
      %v368 = vmul.f32 %v312, %v352
      %v369 = vmul.f32 %v313, %v353
      %v370 = vmul.f32 %v314, %v354
      %v371 = vmul.f32 %v315, %v355
      %v372 = vmul.f32 %v316, %v356
      %v373 = vsub.f32 %v357, %v365
      %v374 = vsub.f32 %v358, %v366
      %v375 = vsub.f32 %v359, %v367
      %v376 = vsub.f32 %v360, %v368
      %v377 = vsub.f32 %v361, %v369
      %v378 = vsub.f32 %v362, %v370
      %v379 = vsub.f32 %v363, %v371
      %v380 = vsub.f32 %v364, %v372
      %v381 = vld [vmem:[%s230] sm:$0xff]
      %v382 = vld [vmem:[%s230 + $0x8] sm:$0xff]
      %v383 = vld [vmem:[%s230 + $0x10] sm:$0xff]
      %v384 = vld [vmem:[%s230 + $0x18] sm:$0xff]
      %v385 = vld [vmem:[%s233] sm:$0x1]
      %v387 = vlaneseq
      %v388 = vshrl.u32 %v387, 7
      %v389 = vsub.s32 0, %v388
      %v390 = vrot.slane %v385, %v389
      %v393 = vsel %vm252, %v373, 0
      %v396 = vsel %vm252, %v374, 0
      %v399 = vsel %vm252, %v375, 0
      %v402 = vsel %vm252, %v376, 0
      %v405 = vsel %vm252, %v377, 0
      %v408 = vsel %vm252, %v378, 0
      %v411 = vsel %vm252, %v379, 0
      %v414 = vsel %vm252, %v380, 0
      %416 = vmatprep.subr.mxu0 0.0
      %417 = vmatpush1.msra.mxu0 %v381
      %418 = vmatprep.subr.mxu0 0.0
      %419 = vmatpush1.msra.mxu0 %v382
      %420 = vmatprep.subr.mxu0 0.0
      %421 = vmatpush1.msra.mxu0 %v383
      %422 = vmatprep.subr.mxu0 0.0
      %423 = vmatpush1.msra.mxu0 %v384
      %424 = vmatprep.subr.mxu0 0.0
      %425 = vmatpush1.msra.mxu0 0.0
      %426 = vmatprep.subr.mxu0 0.0
      %427 = vmatpush1.msra.mxu0 0.0
      %428 = vmatprep.subr.mxu0 0.0
      %429 = vmatpush1.msra.mxu0 0.0
      %430 = vmatprep.subr.mxu0 0.0
      %431 = vmatpush1.msra.mxu0 0.0
      %432 = vmatprep.subr.mxu0 0.0
      %433 = vmatpush1.msra.mxu0 0.0
      %434 = vmatprep.subr.mxu0 0.0
      %435 = vmatpush1.msra.mxu0 0.0
      %436 = vmatprep.subr.mxu0 0.0
      %437 = vmatpush1.msra.mxu0 0.0
      %438 = vmatprep.subr.mxu0 0.0
      %439 = vmatpush1.msra.mxu0 0.0
      %440 = vmatprep.subr.mxu0 0.0
      %441 = vmatpush1.msra.mxu0 0.0
      %442 = vmatprep.subr.mxu0 0.0
      %443 = vmatpush1.msra.mxu0 0.0
      %444 = vmatprep.subr.mxu0 0.0
      %445 = vmatpush1.msra.mxu0 0.0
      %446 = vmatprep.subr.mxu0 0.0
      %447 = vmatpush1.msra.mxu0 0.0
      %448 = vmatprep.subr.mxu0 0.0
      %449 = vmatpush1.msra.mxu0 0.0
      %450 = vmatprep.subr.mxu0 0.0
      %451 = vmatpush1.msra.mxu0 0.0
      %452 = vmatprep.subr.mxu0 0.0
      %453 = vmatpush1.msra.mxu0 0.0
      %454 = vmatprep.subr.mxu0 0.0
      %455 = vmatpush1.msra.mxu0 0.0
      %456 = vmatprep.subr.mxu0 0.0
      %457 = vmatpush1.msra.mxu0 0.0
      %458 = vmatprep.subr.mxu0 0.0
      %459 = vmatpush1.msra.mxu0 0.0
      %460 = vmatprep.subr.mxu0 0.0
      %461 = vmatpush1.msra.mxu0 0.0
      %462 = vmatprep.subr.mxu0 0.0
      %463 = vmatpush1.msra.mxu0 0.0
      %464 = vmatprep.subr.mxu0 0.0
      %465 = vmatpush1.msra.mxu0 0.0
      %466 = vmatprep.subr.mxu0 0.0
      %467 = vmatpush1.msra.mxu0 0.0
      %468 = vmatprep.subr.mxu0 0.0
      %469 = vmatpush1.msra.mxu0 0.0
      %470 = vmatprep.subr.mxu0 0.0
      %471 = vmatpush1.msra.mxu0 0.0
      %472 = vmatprep.subr.mxu0 0.0
      %473 = vmatpush1.msra.mxu0 0.0
      %474 = vmatprep.subr.mxu0 0.0
      %475 = vmatpush1.msra.mxu0 0.0
      %476 = vmatprep.subr.mxu0 0.0
      %477 = vmatpush1.msra.mxu0 0.0
      %478 = vmatprep.subr.mxu0 0.0
      %479 = vmatpush1.msra.mxu0 0.0
      %480 = vmatprep.mubr.f32.mxu0 0.0
      %481 = vmatmul.mubr.f32.gmra.mrb[0].mxu0 %v393
      %v482 = vpop.f32.mrb[0].mxu0
      %v483 = vadd.f32 %v390, %v482
      %v484 = vpop.f32.mrb[0].mxu0
      %485 = vmatprep.mubr.f32.mxu0 0.0
      %486 = vmatmul.mubr.f32.gmra.mrb[0].mxu0 %v396
      %v487 = vpop.f32.mrb[0].mxu0
      %v488 = vadd.f32 %v390, %v487
      %v489 = vpop.f32.mrb[0].mxu0
      %490 = vmatprep.mubr.f32.mxu0 0.0
      %491 = vmatmul.mubr.f32.gmra.mrb[0].mxu0 %v399
      %v492 = vpop.f32.mrb[0].mxu0
      %v493 = vadd.f32 %v390, %v492
      %v494 = vpop.f32.mrb[0].mxu0
      %495 = vmatprep.mubr.f32.mxu0 0.0
      %496 = vmatmul.mubr.f32.gmra.mrb[0].mxu0 %v402
      %v497 = vpop.f32.mrb[0].mxu0
      %v498 = vadd.f32 %v390, %v497
      %v499 = vpop.f32.mrb[0].mxu0
      %500 = vmatprep.mubr.f32.mxu0 0.0
      %501 = vmatmul.mubr.f32.gmra.mrb[0].mxu0 %v405
      %v502 = vpop.f32.mrb[0].mxu0
      %v503 = vadd.f32 %v390, %v502
      %v504 = vpop.f32.mrb[0].mxu0
      %505 = vmatprep.mubr.f32.mxu0 0.0
      %506 = vmatmul.mubr.f32.gmra.mrb[0].mxu0 %v408
      %v507 = vpop.f32.mrb[0].mxu0
      %v508 = vadd.f32 %v390, %v507
      %v509 = vpop.f32.mrb[0].mxu0
      %510 = vmatprep.mubr.f32.mxu0 0.0
      %511 = vmatmul.mubr.f32.gmra.mrb[0].mxu0 %v411
      %v512 = vpop.f32.mrb[0].mxu0
      %v513 = vadd.f32 %v390, %v512
      %v514 = vpop.f32.mrb[0].mxu0
      %515 = vmatprep.mubr.f32.mxu0 0.0
      %516 = vmatmul.mubr.f32.gmra.mrb[0].mxu0 %v414
      %v517 = vpop.f32.mrb[0].mxu0
      %v518 = vadd.f32 %v390, %v517
      %v519 = vpop.f32.mrb[0].mxu0
      %520 = vdwg.mxu0
      %vm521 = vcmask 130048
      %522 = vst.msk [vmem:[%s242] sm:$0xff] %vm521, %v483
      %523 = vst.msk [vmem:[%s242 + $0x8] sm:$0xff] %vm521, %v488
      %524 = vst.msk [vmem:[%s242 + $0x10] sm:$0xff] %vm521, %v493
      %525 = vst.msk [vmem:[%s242 + $0x18] sm:$0xff] %vm521, %v498
      %526 = vst.msk [vmem:[%s242 + $0x20] sm:$0xff] %vm521, %v503
      %527 = vst.msk [vmem:[%s242 + $0x28] sm:$0xff] %vm521, %v508
      %528 = vst.msk [vmem:[%s242 + $0x30] sm:$0xff] %vm521, %v513
      %529 = vst.msk [vmem:[%s242 + $0x38] sm:$0xff] %vm521, %v518
      %s530 = smul.u32 8, %s19
      %p531 = scmp.lt.s32.totalorder %s18, 1
      %s532 = scalar_select %p531, %s18, 1
      %p533 = scmp.lt.s32.totalorder %s530, 7
      %s534 = scalar_select %p533, %s530, 7
      %s535 = smul.addr %s532, 8
      %s536 = sadd.s32 %s534, %s535
      %s537 = smul.addr %s536, 8
      %s538 = scalar_lea.vmem %s3, %s537
      // Predicated region
      $region33: #{tpu_custom_call.1} parent=31 // pred_check
        %p539 = pneg %p126
      $region34: #{tpu_custom_call.1} parent=31 // pred_check_branch
        %541 = sbr.rel (%p539) target = $region36
      $region35: #{tpu_custom_call.1} parent=31 // pred_region
        %s542 = smul.u32 8, %s19
      $region36: #{tpu_custom_call.1} parent=31 // pred_fallthru
        _
    $region32: #{tpu_custom_call.1} parent=5 // pred_fallthru
      _
    %p543 = scmp.le.s32.totalorder 2, %s9
    // Predicated region
    $region37: #{tpu_custom_call.1} parent=5 // pred_check
      %p544 = pneg %p543
    $region38: #{tpu_custom_call.1} parent=5 // pred_check_branch
      %546 = sbr.rel (%p544) target = $region40
    $region39: #{tpu_custom_call.1} parent=5 // pred_region
      %s547 = ssub.s32 %s9, 2
      // Predicated region
      $region41: #{tpu_custom_call.1} parent=39 // pred_check
        %p548 = pneg %p132
      $region42: #{tpu_custom_call.1} parent=39 // pred_check_branch
        %550 = sbr.rel (%p548) target = $region44
      $region43: #{tpu_custom_call.1} parent=39 // pred_region
        %s551 = smul.u32 8, %s21
        %p552 = scmp.lt.s32.totalorder %s20, 1
        %s553 = scalar_select %p552, %s20, 1
        %p554 = scmp.lt.s32.totalorder %s551, 7
        %s555 = scalar_select %p554, %s551, 7
        %s556 = smul.addr %s553, 8
        %s557 = sadd.s32 %s555, %s556
        %s558 = smul.addr %s557, 8
        %s559 = scalar_lea.vmem %s3, %s558
      $region44: #{tpu_custom_call.1} parent=39 // pred_fallthru
        _
    $region40: #{tpu_custom_call.1} parent=5 // pred_fallthru
      _
  $region6: #{tpu_custom_call.1} parent=0 // loop_footer
    %s13 = sadd.s32 1, %s9
  $region7: #{tpu_custom_call.1} parent=0 // loop_footer_branch
    %8 = sbr.rel target = $region3
  $region8: #{tpu_custom_call.1} parent=0 // loop_exit
    _

</llo_original>
